<compile_context>
chip_gen: v7x
topology: tpu7x:2x2x1
jax: 0.10.0
libtpu: 0.0.40
codegen_flags: <defaults>
</compile_context>

<pallas_src>
import jax
import jax.numpy as jnp
from jax import lax
from jax.experimental import pallas as pl
from jax.experimental.pallas import tpu as pltpu

NEG_INF = -jnp.inf  # valid for float dtypes only (MaxPool on floats)


def _round_up(x, m):
    return (x + m - 1) // m * m


def _extract_windows_kp(x, kernel, stride, padding):
    """Pure-layout im2col for 3D max pooling with stride == kernel.

    x: (N, C, D, H, W)  ->  (K, N*C*Do*Ho*Wo)  with K = kd*kh*kw on sublanes
    and the output-position axis last (lanes).
    """
    n, c, d, h, w = x.shape
    kd, kh, kw = kernel
    sd, sh, sw = stride
    pd, ph, pw = padding
    if pd or ph or pw:
        x = jnp.pad(
            x,
            ((0, 0), (0, 0), (pd, pd), (ph, ph), (pw, pw)),
            constant_values=NEG_INF,
        )
        d, h, w = d + 2 * pd, h + 2 * ph, w + 2 * pw
    do = (d - kd) // sd + 1
    ho = (h - kh) // sh + 1
    wo = (w - kw) // sw + 1
    # Crop to an exact tiling (floor semantics, ceil_mode=False like PyTorch).
    x = x[:, :, : do * sd, : ho * sh, : wo * sw]
    x = x.reshape(n, c, do, kd, ho, kh, wo, kw)
    # -> (kd, kh, kw, n, c, do, ho, wo): window axis leading, positions last.
    x = x.transpose(3, 5, 7, 0, 1, 2, 4, 6)
    return x.reshape(kd * kh * kw, n * c * do * ho * wo)


def _spp_pool_kernel(w1_ref, w2_ref, o1_ref, o2_ref):
    # Pool 1: max over the K1=18 window rows (VPU maximum chain, lane-dense).
    w1 = w1_ref[...]
    acc1 = w1[0:1, :]
    for i in range(1, w1.shape[0]):
        acc1 = jnp.maximum(acc1, w1[i:i + 1, :])
    o1_ref[...] = acc1

    # Pool 2: max over the K2=4 window rows (-inf padding baked in).
    w2 = w2_ref[...]
    acc2 = w2[0:1, :]
    for i in range(1, w2.shape[0]):
        acc2 = jnp.maximum(acc2, w2[i:i + 1, :])
    o2_ref[...] = acc2


def spp_forward(x, *, tiles=2):
    """Forward pass matching the PyTorch SPP module. x: (N, C, D, H, W) float."""
    n = x.shape[0]
    dtype = x.dtype

    # (K, N*P) window slabs; stride == kernel for both pools.
    win1 = _extract_windows_kp(x, (2, 3, 3), (2, 3, 3), (0, 0, 0))
    win2 = _extract_windows_kp(x, (1, 2, 2), (1, 2, 2), (0, 1, 1))

    k1, l1 = win1.shape
    k2, l2 = win2.shape

    # Pad the lane (P) axis so each of `tiles` grid blocks is a multiple of
    # 128 lanes -> unmasked vector stores and a clean 2-way parallel split.
    lane = 128 * tiles
    l1p = _round_up(l1, lane)
    l2p = _round_up(l2, lane)
    win1 = jnp.pad(win1, ((0, 0), (0, l1p - l1)), constant_values=NEG_INF)
    win2 = jnp.pad(win2, ((0, 0), (0, l2p - l2)), constant_values=NEG_INF)
    b1 = l1p // tiles
    b2 = l2p // tiles

    out1, out2 = pl.pallas_call(
        _spp_pool_kernel,
        out_shape=(
            jax.ShapeDtypeStruct((1, l1p), dtype),
            jax.ShapeDtypeStruct((1, l2p), dtype),
        ),
        grid_spec=pltpu.PrefetchScalarGridSpec(
            num_scalar_prefetch=0,
            grid=(tiles,),
            in_specs=[
                pl.BlockSpec((k1, b1), lambda i: (0, i)),
                pl.BlockSpec((k2, b2), lambda i: (0, i)),
            ],
            out_specs=[
                pl.BlockSpec((1, b1), lambda i: (0, i)),
                pl.BlockSpec((1, b2), lambda i: (0, i)),
            ],
        ),
        compiler_params=pltpu.CompilerParams(
            dimension_semantics=("parallel",),
        ),
    )(win1, win2)

    # Drop lane padding and restore per-batch rows; concat with the raw
    # flattened input in plain XLA (lane-aligned kernel outputs, no in-kernel
    # pass-through copy).
    p1 = out1[0, :l1].reshape(n, -1)
    p2 = out2[0, :l2].reshape(n, -1)
    return jnp.concatenate([x.reshape(n, -1), p1, p2], axis=1)


def spp_reference(x):
    """Pure-JAX reference mirroring the PyTorch forward."""
    neg = -jnp.inf
    x1 = lax.reduce_window(
        x, neg, lax.max,
        window_dimensions=(1, 1, 2, 3, 3),
        window_strides=(1, 1, 2, 3, 3),
        padding=[(0, 0)] * 5,
    )
    x2 = lax.reduce_window(
        x, neg, lax.max,
        window_dimensions=(1, 1, 1, 2, 2),
        window_strides=(1, 1, 1, 2, 2),
        padding=[(0, 0), (0, 0), (0, 0), (1, 1), (1, 1)],
    )
    n = x.shape[0]
    return jnp.concatenate(
        [x.reshape(n, -1), x1.reshape(n, -1), x2.reshape(n, -1)], axis=1
    )


if __name__ == "__main__":
    key = jax.random.PRNGKey(0)
    # Small NCDHW input: batch=2, channels=4, depth=4, H=W=6.
    x = jax.random.normal(key, (2, 4, 4, 6, 6), dtype=jnp.float32)

    out = spp_forward(x)
    out = jax.block_until_ready(out)

    ref = spp_reference(x)
    expected_dim = 4 * 4 * 6 * 6 + 4 * 2 * 2 * 2 + 4 * 4 * 4 * 4  # 576+32+256
    assert out.shape == (2, expected_dim), out.shape
    if not jnp.allclose(out, ref, atol=0.0, rtol=0.0):
        raise AssertionError("Pallas SPP output mismatch vs reference")
    print("KERNEL_OK")
</pallas_src>

<mosaic_0001>
module attributes {stable_mosaic.version = 11 : i64} {
  func.func @_spp_pool_kernel(%arg0: i32, %arg1: memref<18x128xf32, #tpu.memory_space<vmem>>, %arg2: memref<4x256xf32, #tpu.memory_space<vmem>>, %arg3: memref<1x128xf32, #tpu.memory_space<vmem>>, %arg4: memref<1x256xf32, #tpu.memory_space<vmem>>) attributes {dimension_semantics = [#tpu.dimension_semantics<parallel>], iteration_bounds = array<i64: 2>, scalar_prefetch = 0 : i64, scratch_operands = 0 : i64, tpu.core_type = #tpu.core_type<tc>, window_params = [{transform_indices = @transform_0, window_bounds = array<i64: 18, 128>}, {transform_indices = @transform_1, window_bounds = array<i64: 4, 256>}, {transform_indices = @transform_2, window_bounds = array<i64: 1, 128>}, {transform_indices = @transform_3, window_bounds = array<i64: 1, 256>}]} {
    %c0 = arith.constant 0 : index
    %c0_0 = arith.constant 0 : index
    %0 = vector.load %arg1[%c0, %c0_0] : memref<18x128xf32, #tpu.memory_space<vmem>>, vector<18x128xf32>
    %1 = vector.extract_strided_slice %0 {offsets = [0, 0], sizes = [1, 128], strides = [1, 1]} : vector<18x128xf32> to vector<1x128xf32>
    %2 = vector.extract_strided_slice %0 {offsets = [1, 0], sizes = [1, 128], strides = [1, 1]} : vector<18x128xf32> to vector<1x128xf32>
    %3 = arith.maximumf %1, %2 : vector<1x128xf32>
    %4 = vector.extract_strided_slice %0 {offsets = [2, 0], sizes = [1, 128], strides = [1, 1]} : vector<18x128xf32> to vector<1x128xf32>
    %5 = arith.maximumf %3, %4 : vector<1x128xf32>
    %6 = vector.extract_strided_slice %0 {offsets = [3, 0], sizes = [1, 128], strides = [1, 1]} : vector<18x128xf32> to vector<1x128xf32>
    %7 = arith.maximumf %5, %6 : vector<1x128xf32>
    %8 = vector.extract_strided_slice %0 {offsets = [4, 0], sizes = [1, 128], strides = [1, 1]} : vector<18x128xf32> to vector<1x128xf32>
    %9 = arith.maximumf %7, %8 : vector<1x128xf32>
    %10 = vector.extract_strided_slice %0 {offsets = [5, 0], sizes = [1, 128], strides = [1, 1]} : vector<18x128xf32> to vector<1x128xf32>
    %11 = arith.maximumf %9, %10 : vector<1x128xf32>
    %12 = vector.extract_strided_slice %0 {offsets = [6, 0], sizes = [1, 128], strides = [1, 1]} : vector<18x128xf32> to vector<1x128xf32>
    %13 = arith.maximumf %11, %12 : vector<1x128xf32>
    %14 = vector.extract_strided_slice %0 {offsets = [7, 0], sizes = [1, 128], strides = [1, 1]} : vector<18x128xf32> to vector<1x128xf32>
    %15 = arith.maximumf %13, %14 : vector<1x128xf32>
    %16 = vector.extract_strided_slice %0 {offsets = [8, 0], sizes = [1, 128], strides = [1, 1]} : vector<18x128xf32> to vector<1x128xf32>
    %17 = arith.maximumf %15, %16 : vector<1x128xf32>
    %18 = vector.extract_strided_slice %0 {offsets = [9, 0], sizes = [1, 128], strides = [1, 1]} : vector<18x128xf32> to vector<1x128xf32>
    %19 = arith.maximumf %17, %18 : vector<1x128xf32>
    %20 = vector.extract_strided_slice %0 {offsets = [10, 0], sizes = [1, 128], strides = [1, 1]} : vector<18x128xf32> to vector<1x128xf32>
    %21 = arith.maximumf %19, %20 : vector<1x128xf32>
    %22 = vector.extract_strided_slice %0 {offsets = [11, 0], sizes = [1, 128], strides = [1, 1]} : vector<18x128xf32> to vector<1x128xf32>
    %23 = arith.maximumf %21, %22 : vector<1x128xf32>
    %24 = vector.extract_strided_slice %0 {offsets = [12, 0], sizes = [1, 128], strides = [1, 1]} : vector<18x128xf32> to vector<1x128xf32>
    %25 = arith.maximumf %23, %24 : vector<1x128xf32>
    %26 = vector.extract_strided_slice %0 {offsets = [13, 0], sizes = [1, 128], strides = [1, 1]} : vector<18x128xf32> to vector<1x128xf32>
    %27 = arith.maximumf %25, %26 : vector<1x128xf32>
    %28 = vector.extract_strided_slice %0 {offsets = [14, 0], sizes = [1, 128], strides = [1, 1]} : vector<18x128xf32> to vector<1x128xf32>
    %29 = arith.maximumf %27, %28 : vector<1x128xf32>
    %30 = vector.extract_strided_slice %0 {offsets = [15, 0], sizes = [1, 128], strides = [1, 1]} : vector<18x128xf32> to vector<1x128xf32>
    %31 = arith.maximumf %29, %30 : vector<1x128xf32>
    %32 = vector.extract_strided_slice %0 {offsets = [16, 0], sizes = [1, 128], strides = [1, 1]} : vector<18x128xf32> to vector<1x128xf32>
    %33 = arith.maximumf %31, %32 : vector<1x128xf32>
    %34 = vector.extract_strided_slice %0 {offsets = [17, 0], sizes = [1, 128], strides = [1, 1]} : vector<18x128xf32> to vector<1x128xf32>
    %35 = arith.maximumf %33, %34 : vector<1x128xf32>
    %c0_1 = arith.constant 0 : index
    %c0_2 = arith.constant 0 : index
    %36 = vector.load %arg3[%c0_1, %c0_2] : memref<1x128xf32, #tpu.memory_space<vmem>>, vector<1x128xf32>
    tpu.vector_store %arg3[%c0_1, %c0_2], %35 {strides = array<i32>} : memref<1x128xf32, #tpu.memory_space<vmem>>, vector<1x128xf32>,
    %c0_3 = arith.constant 0 : index
    %c0_4 = arith.constant 0 : index
    %37 = vector.load %arg2[%c0_3, %c0_4] : memref<4x256xf32, #tpu.memory_space<vmem>>, vector<4x256xf32>
    %38 = vector.extract_strided_slice %37 {offsets = [0, 0], sizes = [1, 256], strides = [1, 1]} : vector<4x256xf32> to vector<1x256xf32>
    %39 = vector.extract_strided_slice %37 {offsets = [1, 0], sizes = [1, 256], strides = [1, 1]} : vector<4x256xf32> to vector<1x256xf32>
    %40 = arith.maximumf %38, %39 : vector<1x256xf32>
    %41 = vector.extract_strided_slice %37 {offsets = [2, 0], sizes = [1, 256], strides = [1, 1]} : vector<4x256xf32> to vector<1x256xf32>
    %42 = arith.maximumf %40, %41 : vector<1x256xf32>
    %43 = vector.extract_strided_slice %37 {offsets = [3, 0], sizes = [1, 256], strides = [1, 1]} : vector<4x256xf32> to vector<1x256xf32>
    %44 = arith.maximumf %42, %43 : vector<1x256xf32>
    %c0_5 = arith.constant 0 : index
    %c0_6 = arith.constant 0 : index
    %45 = vector.load %arg4[%c0_5, %c0_6] : memref<1x256xf32, #tpu.memory_space<vmem>>, vector<1x256xf32>
    tpu.vector_store %arg4[%c0_5, %c0_6], %44 {strides = array<i32>} : memref<1x256xf32, #tpu.memory_space<vmem>>, vector<1x256xf32>,
    return
  }
  func.func @transform_0(%arg0: i32) -> (i32, i32) {
    %c0_i32 = arith.constant 0 : i32
    %c0_i32_0 = arith.constant 0 : i32
    return %c0_i32, %arg0 : i32, i32
  }
  func.func @transform_1(%arg0: i32) -> (i32, i32) {
    %c0_i32 = arith.constant 0 : i32
    %c0_i32_0 = arith.constant 0 : i32
    return %c0_i32, %arg0 : i32, i32
  }
  func.func @transform_2(%arg0: i32) -> (i32, i32) {
    %c0_i32 = arith.constant 0 : i32
    %c0_i32_0 = arith.constant 0 : i32
    return %c0_i32, %arg0 : i32, i32
  }
  func.func @transform_3(%arg0: i32) -> (i32, i32) {
    %c0_i32 = arith.constant 0 : i32
    %c0_i32_0 = arith.constant 0 : i32
    return %c0_i32, %arg0 : i32, i32
  }
}

</mosaic_0001>

<llo_original>
// kernel: tpu_custom_call.1
$region0: #{tpu_custom_call.1}
  #allocation0 [shape = 'u32[]', space=smem, size = 0x4, offset = 0x4, fixed_abs, tag = 'smem constant byte address 0x4 - core index']
  #allocation1 [shape = 'u32[144,128]{1,0:T(1,128)}', space=vmem, size = 0x12000, scoped, tag = 'internal scratch']
  %s0 = inlined_call_operand.hbm [shape: f32[18,256], index: 0, kind: input, shape index: {}]
  %s1 = inlined_call_operand.hbm [shape: f32[4,512], index: 1, kind: input, shape index: {}]
  %s2 = inlined_call_operand.hbm [shape: f32[1,256], index: 2, kind: output, shape index: {0}]
  %s3 = inlined_call_operand.hbm [shape: f32[1,512], index: 3, kind: output, shape index: {1}]
  %4 = xla_tuple %s2, %s3
  %s5 = sld [smem:[#allocation0]]
  $region57: #{tpu_custom_call.1} parent=0
    _
  %s7 = ssub.s32 1, %s5
  %s8 = scalar_select 0, %s7, %s5
  $region1: #{tpu_custom_call.1} parent=0
    #allocation2 [shape = 'u8[24576]{0}', space=vmem, size = 0x6000, scoped, tag = 'input window, operand 0']
    #allocation3 [shape = 's32[2]{0}', space=sflag, size = 0x8, scoped, tag = 'scoped memory for tpu_custom_call.1']
    #allocation4 [shape = 's32[2]{0}', space=sflag, size = 0x8, scoped, tag = 'scoped memory for tpu_custom_call.1']
    #allocation5 [shape = 'u8[8192]{0}', space=vmem, size = 0x2000, scoped, tag = 'input window, operand 1']
    #allocation6 [shape = 's32[2]{0}', space=sflag, size = 0x8, scoped, tag = 'scoped memory for tpu_custom_call.1']
    #allocation7 [shape = 'u8[1024]{0}', space=vmem, size = 0x400, scoped, tag = 'output window, operand 0']
    #allocation8 [shape = 'u8[2048]{0}', space=vmem, size = 0x800, scoped, tag = 'output window, operand 1']
    #allocation9 [shape = 's32[2]{0}', space=sflag, size = 0x8, scoped, tag = 'scoped memory for tpu_custom_call.1']
    %9 = vsyncpa [#allocation3], 0
    %s10 = scalar_lea.sflag [#allocation3], 1
    %11 = vsyncpa %s10, 0
    %12 = vsyncpa [#allocation6], 0
    %s13 = scalar_lea.sflag [#allocation6], 1
    %14 = vsyncpa %s13, 0
    %15 = vsyncpa [#allocation4], 0
    %s16 = scalar_lea.sflag [#allocation4], 1
    %17 = vsyncpa %s16, 0
    %18 = vsyncpa [#allocation9], 0
    %s19 = scalar_lea.sflag [#allocation9], 1
    %20 = vsyncpa %s19, 0
    loop: start=0, step=1, limit=4
    $region2: #{tpu_custom_call.1} parent=1 // loop_pre_header
      _
    $region3: #{tpu_custom_call.1} parent=1 // loop_header
      %s22 = sphi 0, %s26
      %p23 = scmp.ge.s32.totalorder %s22, 4
      %s32 = sphi 0, %s34
      %s35 = sphi 0, %s32
      %s36 = sphi 0, %s35
      %s52 = sphi 0, %s36
      %s58 = sphi 0, %s60
      %s61 = sphi 0, %s58
      %s62 = sphi 0, %s61
      %s78 = sphi 0, %s62
      %s84 = sphi 0, %s86
      %s87 = sphi 0, %s84
      %s88 = sphi 0, %s87
      %s104 = sphi 0, %s88
      %s110 = sphi 0, %s112
      %s113 = sphi 0, %s110
      %s114 = sphi 0, %s113
      %s130 = sphi 0, %s114
    $region4: #{tpu_custom_call.1} parent=1 // loop_header_branch
      %25 = sbr.rel (%p23) target = $region8
    $region5: #{tpu_custom_call.1} parent=1 // loop_body
      %s27 = ssub.s32 %s22, 1
      %s28 = ssub.s32 %s22, 2
      %s29 = sadd.s32 %s22, 1
      %s30 = ssub.s32 %s22, %s29
      %p31 = scmp.eq.s32.totalorder %s30, 0
      %s33 = sadd.s32 %s32, 1
      %s34 = scalar_select %p31, %s32, %s33
      %p37 = pneg %p31
      %p38 = scmp.eq.s32.totalorder %s22, 1
      %p39 = por %p37, %p38
      %p40 = scmp.ne.s32.totalorder %s32, %s35
      %p41 = scmp.eq.s32.totalorder %s22, 0
      %p42 = por %p40, %p41
      %p43 = scmp.ne.s32.totalorder %s32, %s35
      %p44 = scmp.eq.s32.totalorder %s27, 1
      %p45 = por %p43, %p44
      %p46 = scmp.ne.s32.totalorder %s35, %s36
      %p47 = scmp.eq.s32.totalorder %s27, 0
      %p48 = por %p46, %p47
      %p49 = scmp.ne.s32.totalorder %s35, %s36
      %p50 = scmp.eq.s32.totalorder %s28, 1
      %p51 = por %p49, %p50
      %p53 = scmp.ne.s32.totalorder %s36, %s52
      %p54 = scmp.eq.s32.totalorder %s28, 0
      %p55 = por %p53, %p54
      %s56 = ssub.s32 %s22, %s29
      %p57 = scmp.eq.s32.totalorder %s56, 0
      %s59 = sadd.s32 %s58, 1
      %s60 = scalar_select %p57, %s58, %s59
      %p63 = pneg %p57
      %p64 = scmp.eq.s32.totalorder %s22, 1
      %p65 = por %p63, %p64
      %p66 = scmp.ne.s32.totalorder %s58, %s61
      %p67 = scmp.eq.s32.totalorder %s22, 0
      %p68 = por %p66, %p67
      %p69 = scmp.ne.s32.totalorder %s58, %s61
      %p70 = scmp.eq.s32.totalorder %s27, 1
      %p71 = por %p69, %p70
      %p72 = scmp.ne.s32.totalorder %s61, %s62
      %p73 = scmp.eq.s32.totalorder %s27, 0
      %p74 = por %p72, %p73
      %p75 = scmp.ne.s32.totalorder %s61, %s62
      %p76 = scmp.eq.s32.totalorder %s28, 1
      %p77 = por %p75, %p76
      %p79 = scmp.ne.s32.totalorder %s62, %s78
      %p80 = scmp.eq.s32.totalorder %s28, 0
      %p81 = por %p79, %p80
      %s82 = ssub.s32 %s22, %s29
      %p83 = scmp.eq.s32.totalorder %s82, 0
      %s85 = sadd.s32 %s84, 1
      %s86 = scalar_select %p83, %s84, %s85
      %p89 = pneg %p83
      %p90 = scmp.eq.s32.totalorder %s22, 1
      %p91 = por %p89, %p90
      %p92 = scmp.ne.s32.totalorder %s84, %s87
      %p93 = scmp.eq.s32.totalorder %s22, 0
      %p94 = por %p92, %p93
      %p95 = scmp.ne.s32.totalorder %s84, %s87
      %p96 = scmp.eq.s32.totalorder %s27, 1
      %p97 = por %p95, %p96
      %p98 = scmp.ne.s32.totalorder %s87, %s88
      %p99 = scmp.eq.s32.totalorder %s27, 0
      %p100 = por %p98, %p99
      %p101 = scmp.ne.s32.totalorder %s87, %s88
      %p102 = scmp.eq.s32.totalorder %s28, 1
      %p103 = por %p101, %p102
      %p105 = scmp.ne.s32.totalorder %s88, %s104
      %p106 = scmp.eq.s32.totalorder %s28, 0
      %p107 = por %p105, %p106
      %s108 = ssub.s32 %s22, %s29
      %p109 = scmp.eq.s32.totalorder %s108, 0
      %s111 = sadd.s32 %s110, 1
      %s112 = scalar_select %p109, %s110, %s111
      %p115 = pneg %p109
      %p116 = scmp.eq.s32.totalorder %s22, 1
      %p117 = por %p115, %p116
      %p118 = scmp.ne.s32.totalorder %s110, %s113
      %p119 = scmp.eq.s32.totalorder %s22, 0
      %p120 = por %p118, %p119
      %p121 = scmp.ne.s32.totalorder %s110, %s113
      %p122 = scmp.eq.s32.totalorder %s27, 1
      %p123 = por %p121, %p122
      %p124 = scmp.ne.s32.totalorder %s113, %s114
      %p125 = scmp.eq.s32.totalorder %s27, 0
      %p126 = por %p124, %p125
      %p127 = scmp.ne.s32.totalorder %s113, %s114
      %p128 = scmp.eq.s32.totalorder %s28, 1
      %p129 = por %p127, %p128
      %p131 = scmp.ne.s32.totalorder %s114, %s130
      %p132 = scmp.eq.s32.totalorder %s28, 0
      %p133 = por %p131, %p132
      %p134 = scmp.le.s32.totalorder 1, %s22
      %p135 = scmp.lt.s32.totalorder %s22, 3
      %p136 = pnand %p134, %p135
      %p137 = pneg %p136
      // Predicated region
      $region9: #{tpu_custom_call.1} parent=5 // pred_check
        _
      $region10: #{tpu_custom_call.1} parent=5 // pred_check_branch
        %139 = sbr.rel (%p136) target = $region12
      $region11: #{tpu_custom_call.1} parent=5 // pred_region
        %s140 = ssub.s32 %s22, 1
      $region12: #{tpu_custom_call.1} parent=5 // pred_fallthru
        _
      %p141 = scmp.lt.s32.totalorder %s22, 2
      // Predicated region
      $region13: #{tpu_custom_call.1} parent=5 // pred_check
        %p142 = pneg %p141
      $region14: #{tpu_custom_call.1} parent=5 // pred_check_branch
        %144 = sbr.rel (%p142) target = $region16
      $region15: #{tpu_custom_call.1} parent=5 // pred_region
        // Predicated region
        $region17: #{tpu_custom_call.1} parent=15 // pred_check
          %p145 = pneg %p42
        $region18: #{tpu_custom_call.1} parent=15 // pred_check_branch
          %147 = sbr.rel (%p145) target = $region20
        $region19: #{tpu_custom_call.1} parent=15 // pred_region
          %s148 = sand.u32 %s32, 1
          %s149 = scalar_lea.sflag [#allocation3], %s148
          %s150 = sand.u32 %s32, 1
          %s151 = smul.addr %s150, 24
          %s152 = scalar_lea.vmem [#allocation2], %s151
          %s154 = ssub.s32 384, 384
          %155 = vsyncadd %s149, %s154
          %s156 = smul.addr %s22, 128
          %s157 = scalar_lea.hbm %s0, %s156
          %s158 = sshll.u32 %s152, 4
          %s159 = int_to_ptr.vmem [resolvable:$true] %s158
          %164 = dma.hbm_to_vmem [thread:$0]  %s157, 384, %s159, %s149, 256, 128, 8
        $region20: #{tpu_custom_call.1} parent=15 // pred_fallthru
          _
        // Predicated region
        $region21: #{tpu_custom_call.1} parent=15 // pred_check
          %p165 = pneg %p68
        $region22: #{tpu_custom_call.1} parent=15 // pred_check_branch
          %167 = sbr.rel (%p165) target = $region24
        $region23: #{tpu_custom_call.1} parent=15 // pred_region
          %s168 = sand.u32 %s58, 1
          %s169 = scalar_lea.sflag [#allocation6], %s168
          %s170 = sand.u32 %s58, 1
          %s171 = smul.addr %s170, 8
          %s172 = scalar_lea.vmem [#allocation5], %s171
          %s173 = smul.u32 2, %s22
          %s175 = ssub.s32 128, 128
          %176 = vsyncadd %s169, %s175
          %s177 = smul.addr %s173, 64
          %s178 = scalar_lea.hbm %s1, %s177
          %s180 = sshll.u32 %s172, 4
          %s181 = int_to_ptr.vmem [resolvable:$true] %s180
          %183 = dma.hbm_to_vmem [thread:$0]  %s178, 128, %s181, %s169
        $region24: #{tpu_custom_call.1} parent=15 // pred_fallthru
          _
      $region16: #{tpu_custom_call.1} parent=5 // pred_fallthru
        _
      %p184 = scmp.le.s32.totalorder 1, %s22
      %p185 = scmp.lt.s32.totalorder %s22, 3
      %p186 = pnand %p184, %p185
      %p187 = pneg %p186
      // Predicated region
      $region25: #{tpu_custom_call.1} parent=5 // pred_check
        _
      $region26: #{tpu_custom_call.1} parent=5 // pred_check_branch
        %189 = sbr.rel (%p186) target = $region28
      $region27: #{tpu_custom_call.1} parent=5 // pred_region
        %s190 = ssub.s32 %s22, 1
        %s191 = sand.u32 %s35, 1
        %s192 = scalar_lea.sflag [#allocation3], %s191
        %s193 = sand.u32 %s35, 1
        %s194 = smul.addr %s193, 24
        %s195 = scalar_lea.vmem [#allocation2], %s194
        // Predicated region
        $region29: #{tpu_custom_call.1} parent=27 // pred_check
          %p196 = pneg %p48
        $region30: #{tpu_custom_call.1} parent=27 // pred_check_branch
          %198 = sbr.rel (%p196) target = $region32
        $region31: #{tpu_custom_call.1} parent=27 // pred_region
          %199 = dma.done %s192, 384
        $region32: #{tpu_custom_call.1} parent=27 // pred_fallthru
          _
        %s200 = sand.u32 %s61, 1
        %s201 = scalar_lea.sflag [#allocation6], %s200
        %s202 = sand.u32 %s61, 1
        %s203 = smul.addr %s202, 8
        %s204 = scalar_lea.vmem [#allocation5], %s203
        // Predicated region
        $region33: #{tpu_custom_call.1} parent=27 // pred_check
          %p205 = pneg %p74
        $region34: #{tpu_custom_call.1} parent=27 // pred_check_branch
          %207 = sbr.rel (%p205) target = $region36
        $region35: #{tpu_custom_call.1} parent=27 // pred_region
          %208 = dma.done %s201, 128
        $region36: #{tpu_custom_call.1} parent=27 // pred_fallthru
          _
        %s209 = sand.u32 %s35, 1
        %s210 = scalar_lea.sflag [#allocation3], %s209
        %s211 = sand.u32 %s35, 1
        %s212 = smul.addr %s211, 24
        %s213 = scalar_lea.vmem [#allocation2], %s212
        %p214 = pneg %p48
        %p215 = pneg %p45
        %s216 = sand.u32 %s61, 1
        %s217 = scalar_lea.sflag [#allocation6], %s216
        %s218 = sand.u32 %s61, 1
        %s219 = smul.addr %s218, 8
        %s220 = scalar_lea.vmem [#allocation5], %s219
        %p221 = pneg %p74
        %p222 = pneg %p71
        %p223 = pneg %p100
        %p224 = pneg %p97
        %s225 = sand.u32 %s87, 1
        %s226 = scalar_lea.sflag [#allocation4], %s225
        %s227 = sand.u32 %s87, 1
        %s228 = scalar_lea.vmem [#allocation7], %s227
        %p229 = pneg %p126
        %p230 = pneg %p123
        %s231 = sand.u32 %s113, 1
        %s232 = scalar_lea.sflag [#allocation9], %s231
        %s233 = sand.u32 %s113, 1
        %s234 = smul.addr %s233, 2
        %s235 = scalar_lea.vmem [#allocation8], %s234
        %s236 = smul.u32 2, %s27
        %s237 = smul.u32 2, %s27
        %v238 = vld [vmem:[%s195] sm:$0xff]
        %v239 = vld [vmem:[%s195 + $0x8] sm:$0xff]
        %v240 = vld [vmem:[%s195 + $0x10] sm:$0x3]
        %v242 = vrot.slane %v238, 1
        %v244 = vmax.f32 %v238, %v242
        %v245 = vrot.slane %v238, 2
        %v247 = vmax.f32 %v244, %v245
        %v248 = vrot.slane %v238, 3
        %v250 = vmax.f32 %v247, %v248
        %v251 = vrot.slane %v238, 4
        %v253 = vmax.f32 %v250, %v251
        %v254 = vrot.slane %v238, 5
        %v256 = vmax.f32 %v253, %v254
        %v257 = vrot.slane %v238, 6
        %v259 = vmax.f32 %v256, %v257
        %v260 = vrot.slane %v238, 7
        %v262 = vmax.f32 %v259, %v260
        %v263 = vmax.f32 %v262, %v239
        %v265 = vrot.slane %v239, 1
        %v267 = vmax.f32 %v263, %v265
        %v268 = vrot.slane %v239, 2
        %v270 = vmax.f32 %v267, %v268
        %v271 = vrot.slane %v239, 3
        %v273 = vmax.f32 %v270, %v271
        %v274 = vrot.slane %v239, 4
        %v276 = vmax.f32 %v273, %v274
        %v277 = vrot.slane %v239, 5
        %v279 = vmax.f32 %v276, %v277
        %v280 = vrot.slane %v239, 6
        %v282 = vmax.f32 %v279, %v280
        %v283 = vrot.slane %v239, 7
        %v285 = vmax.f32 %v282, %v283
        %v286 = vmax.f32 %v285, %v240
        %v288 = vrot.slane %v240, 1
        %v290 = vmax.f32 %v286, %v288
        %291 = vst [vmem:[%s228] sm:$0x1] %v290
        %v292 = vld [vmem:[%s204] sm:$0xff]
        %v294 = vrot.slane %v292, 5
        %v295 = vrot.slane %v294, 4
        %v297 = vmax.f32 %v292, %v295
        %v298 = vrot.slane %v292, 6
        %v299 = vrot.slane %v298, 4
        %v301 = vmax.f32 %v297, %v299
        %v302 = vrot.slane %v292, 7
        %v303 = vrot.slane %v302, 4
        %v305 = vmax.f32 %v301, %v303
        %v308 = vunpack.c.l.s4 1966171168
        %v309 = vunpack.c.0.s8 %v308
        %v310 = vlaneseq
        %v311 = vshrl.u32 %v310, 7
        %v312 = vsub.s32 %v309, %v311
        %v313 = vrot.slane %v305, %v312
        %v315 = vunpack.c.l.s4 1966171168
        %v316 = vunpack.c.0.s8 %v315
        %v317 = vlaneseq
        %v318 = vshrl.u32 %v317, 7
        %v319 = vsub.s32 %v316, %v318
        %v320 = vrot.slane %v313, %v319
        %v322 = vlaneseq
        %vm323 = vcmp.ge.s32.totalorder %v322, 0
        %vm324 = vcmp.lt.s32.totalorder %v322, 256
        %vm325 = vmand %vm323, %vm324
        %326 = vst.msk [vmem:[%s235] sm:$0x3] %vm325, %v320
        %s327 = sand.u32 %s87, 1
        %s328 = scalar_lea.sflag [#allocation4], %s327
        %s329 = sand.u32 %s87, 1
        %s330 = scalar_lea.vmem [#allocation7], %s329
        %s331 = sand.u32 %s113, 1
        %s332 = scalar_lea.sflag [#allocation9], %s331
        %s333 = sand.u32 %s113, 1
        %s334 = smul.addr %s333, 2
        %s335 = scalar_lea.vmem [#allocation8], %s334
        // Predicated region
        $region37: #{tpu_custom_call.1} parent=27 // pred_check
          %p336 = pneg %p97
        $region38: #{tpu_custom_call.1} parent=27 // pred_check_branch
          %338 = sbr.rel (%p336) target = $region40
        $region39: #{tpu_custom_call.1} parent=27 // pred_region
          %s340 = ssub.s32 16, 16
          %341 = vsyncadd %s328, %s340
          %s342 = smul.addr %s27, 16
          %s343 = scalar_lea.hbm %s2, %s342
          %s345 = sshll.u32 %s330, 4
          %s346 = int_to_ptr.vmem [resolvable:$true] %s345
          %348 = dma.vmem_to_hbm [thread:$0]  %s346, 16, %s343, %s328
        $region40: #{tpu_custom_call.1} parent=27 // pred_fallthru
          _
        // Predicated region
        $region41: #{tpu_custom_call.1} parent=27 // pred_check
          %p349 = pneg %p123
        $region42: #{tpu_custom_call.1} parent=27 // pred_check_branch
          %351 = sbr.rel (%p349) target = $region44
        $region43: #{tpu_custom_call.1} parent=27 // pred_region
          %s352 = smul.u32 2, %s27
          %s354 = ssub.s32 32, 32
          %355 = vsyncadd %s332, %s354
          %s356 = smul.addr %s352, 16
          %s357 = scalar_lea.hbm %s3, %s356
          %s359 = sshll.u32 %s335, 4
          %s360 = int_to_ptr.vmem [resolvable:$true] %s359
          %362 = dma.vmem_to_hbm [thread:$0]  %s360, 32, %s357, %s332
        $region44: #{tpu_custom_call.1} parent=27 // pred_fallthru
          _
      $region28: #{tpu_custom_call.1} parent=5 // pred_fallthru
        _
      %p363 = scmp.le.s32.totalorder 2, %s22
      // Predicated region
      $region45: #{tpu_custom_call.1} parent=5 // pred_check
        %p364 = pneg %p363
      $region46: #{tpu_custom_call.1} parent=5 // pred_check_branch
        %366 = sbr.rel (%p364) target = $region48
      $region47: #{tpu_custom_call.1} parent=5 // pred_region
        %s367 = ssub.s32 %s22, 2
        // Predicated region
        $region49: #{tpu_custom_call.1} parent=47 // pred_check
          %p368 = pneg %p103
        $region50: #{tpu_custom_call.1} parent=47 // pred_check_branch
          %370 = sbr.rel (%p368) target = $region52
        $region51: #{tpu_custom_call.1} parent=47 // pred_region
          %s371 = sand.u32 %s88, 1
          %s372 = scalar_lea.sflag [#allocation4], %s371
          %s373 = sand.u32 %s88, 1
          %s374 = scalar_lea.vmem [#allocation7], %s373
          %375 = dma.done %s372, 16
        $region52: #{tpu_custom_call.1} parent=47 // pred_fallthru
          _
        // Predicated region
        $region53: #{tpu_custom_call.1} parent=47 // pred_check
          %p376 = pneg %p129
        $region54: #{tpu_custom_call.1} parent=47 // pred_check_branch
          %378 = sbr.rel (%p376) target = $region56
        $region55: #{tpu_custom_call.1} parent=47 // pred_region
          %s379 = sand.u32 %s114, 1
          %s380 = scalar_lea.sflag [#allocation9], %s379
          %s381 = sand.u32 %s114, 1
          %s382 = smul.addr %s381, 2
          %s383 = scalar_lea.vmem [#allocation8], %s382
          %384 = dma.done %s380, 32
        $region56: #{tpu_custom_call.1} parent=47 // pred_fallthru
          _
      $region48: #{tpu_custom_call.1} parent=5 // pred_fallthru
        _
    $region6: #{tpu_custom_call.1} parent=1 // loop_footer
      %s26 = sadd.s32 1, %s22
    $region7: #{tpu_custom_call.1} parent=1 // loop_footer_branch
      %21 = sbr.rel target = $region3
    $region8: #{tpu_custom_call.1} parent=1 // loop_exit
      _
    %385 = vsyncpa [#allocation3], 1
    %s386 = scalar_lea.sflag [#allocation3], 1
    %387 = vsyncpa %s386, 1
    %388 = vsyncpa [#allocation6], 1
    %s389 = scalar_lea.sflag [#allocation6], 1
    %390 = vsyncpa %s389, 1
    %391 = vsyncpa [#allocation4], 1
    %s392 = scalar_lea.sflag [#allocation4], 1
    %393 = vsyncpa %s392, 1
    %394 = vsyncpa [#allocation9], 1
    %s395 = scalar_lea.sflag [#allocation9], 1
    %396 = vsyncpa %s395, 1

</llo_original>
